<compile_context>
chip_gen: v7x
topology: tpu7x:2x2x1
jax: 0.10.0
libtpu: 0.0.40
codegen_flags: <defaults>
</compile_context>

<pallas_src>
import functools

import jax
import jax.numpy as jnp
from jax.experimental import pallas as pl
from jax.experimental.pallas import tpu as pltpu


# ----------------------------- Pallas kernel --------------------------------
def patch_embed_kernel(patches_ref, w_ref, pos_ref, out_ref):
    # patches_ref: (TM, K)  bf16   (one row tile of one batch element)
    # w_ref:       (K, Ep)  bf16   (resident across the whole grid)
    # pos_ref:     (TM, Ep) bf16   (pos embedding + conv bias; resident across the
    #                               inner batch axis thanks to the grid ordering)
    # out_ref:     (TM, Ep) bf16
    y = jnp.dot(patches_ref[...], w_ref[...], preferred_element_type=jnp.float32)
    out_ref[...] = (y + pos_ref[...].astype(jnp.float32)).astype(out_ref.dtype)


def _choose_tm(n):
    # Prefer large, MXU-friendly row tiles; only multiples of 16 (bf16 sublane
    # packing) unless the full extent is used (block == array dim waives the
    # divisibility constraint, e.g. N = 196 for ViT-B/16).
    for tm in (512, 256, 128, 64, 32, 16):
        if n % tm == 0:
            return tm
    return n


def run_patch_embed(patches, w_t, pos_body):
    B, N, K = patches.shape
    Ep = w_t.shape[1]
    TM = _choose_tm(N)
    return pl.pallas_call(
        patch_embed_kernel,
        out_shape=jax.ShapeDtypeStruct((B, N, Ep), jnp.bfloat16),
        grid_spec=pltpu.PrefetchScalarGridSpec(
            num_scalar_prefetch=0,
            grid=(N // TM, B),  # N-tile axis OUTER, batch INNER (pos not re-fetched per batch)
            in_specs=[
                pl.BlockSpec((None, TM, K), lambda nt, b: (b, nt, 0)),
                # Resident weight (constant index -> fetched once).  On v7x one could
                # additionally single-buffer it (pipeline_mode=pl.Buffered(1)) to save VMEM.
                pl.BlockSpec((K, Ep), lambda nt, b: (0, 0)),
                # pos tile: constant across the inner batch loop.
                pl.BlockSpec((TM, Ep), lambda nt, b: (nt, 0)),
            ],
            out_specs=pl.BlockSpec((None, TM, Ep), lambda nt, b: (b, nt, 0)),
        ),
        compiler_params=pltpu.CompilerParams(
            dimension_semantics=("parallel", "parallel"),
        ),
    )(patches, w_t, pos_body)


# --------------------------- mixture "glue" (JAX) ----------------------------
def mixture_coeff(weights, emb_choices, max_emb):
    """coeff[j] = sum_i alpha_i * [j < e_i]  — equivalent to the per-choice
    pad-and-accumulate loops of PatchembedMixture (use_argmax=False)."""
    idx = jnp.arange(max_emb)
    choices = jnp.asarray(emb_choices)
    mask = (idx[None, :] < choices[:, None]).astype(weights.dtype)   # (n_choices, E)
    return jnp.sum(weights[:, None] * mask, axis=0)                  # (E,)


def extract_patches_nchw(x, patch_size):
    """im2col for a stride==kernel==patch_size, pad=0, dilation=1 conv (NCHW).
    Flattens each patch in (C, ph, pw) order — matches conv-weight flattening."""
    B, C, H, W = x.shape
    P = patch_size
    nH, nW = H // P, W // P
    p = x.reshape(B, C, nH, P, nW, P)
    p = p.transpose(0, 2, 4, 1, 3, 5)            # (B, nH, nW, C, P, P)
    return p.reshape(B, nH * nW, C * P * P)


@functools.partial(jax.jit, static_argnames=("emb_choices", "patch_size"))
def patchembed_mixture_forward(x, weights, op_weight, op_bias, cls_token,
                               pos_embed, emb_choices, patch_size):
    max_emb = max(emb_choices)
    B, C, H, W = x.shape
    P = patch_size
    N = (H // P) * (W // P)
    K = C * P * P

    # ---- parameter mixing via one coefficient vector (no repeated pads) ----
    coeff = mixture_coeff(weights, emb_choices, max_emb)             # (E,)
    conv_w = op_weight * coeff[:, None, None, None]                  # (E, C, P, P)
    conv_b = op_bias * coeff                                         # (E,)
    cls_m = cls_token * coeff                                        # (1, 1, E)
    pos_m = pos_embed * coeff                                        # (1, N+1, E)

    # ---- patchify in bf16 (halves the im2col intermediate's HBM traffic) ----
    # TODO(synk): fold the im2col into the kernel (grid over patch rows, NCHW block
    # (1, C, P, W) + in-VMEM reshuffle) to avoid materializing (B, N, K) in HBM.
    patches = extract_patches_nchw(x.astype(jnp.bfloat16), P)        # (B, N, K) bf16

    # ---- lane-dense operands: pad E to a multiple of 128 ----
    Ep = ((max_emb + 127) // 128) * 128
    w_t = conv_w.reshape(max_emb, K).T.astype(jnp.bfloat16)          # (K, E)
    w_t = jnp.pad(w_t, ((0, 0), (0, Ep - max_emb)))                  # (K, Ep)
    # Fold the conv bias into the body rows of the positional embedding (bf16 stream).
    pos_body = (pos_m[0, 1:, :] + conv_b[None, :]).astype(jnp.bfloat16)   # (N, E)
    pos_body = jnp.pad(pos_body, ((0, 0), (0, Ep - max_emb)))        # (N, Ep)

    # ---- hot path in Pallas: bf16 MXU matmul + fused pos/bias add, bf16 stores ----
    body = run_patch_embed(patches, w_t, pos_body)                   # (B, N, Ep) bf16
    if Ep != max_emb:                                                # free for 384/768/1024
        body = body[..., :max_emb]

    # ---- cls row in the wrapper; concat stays in bf16 (half the copy traffic) ----
    cls_row = (cls_m[0] + pos_m[:, 0, :]).astype(jnp.bfloat16)       # (1, E)
    cls_row = jnp.broadcast_to(cls_row[:, None, :], (B, 1, max_emb)) # (B, 1, E)

    out = jnp.concatenate([cls_row, body], axis=1)                   # (B, N+1, E) bf16
    # Dropout: p = super_dropout * E/E, eval mode => identity.
    return out


# --------------------------------- main --------------------------------------
if __name__ == "__main__":
    # Small shapes consistent with the module:
    B, C, H, W = 2, 4, 16, 16
    P = 4                         # patch_size  -> N = (16/4)^2 = 16 patches
    emb_choices = (16, 24, 32)    # emb_choice_list; max_emb (super_embed_dim) = 32
    E = max(emb_choices)
    N = (H // P) * (W // P)

    key = jax.random.PRNGKey(0)
    k_x, k_w, k_b, k_cls, k_pos, k_a = jax.random.split(key, 6)
    x = jax.random.normal(k_x, (B, C, H, W), jnp.float32)
    op_weight = jax.random.normal(k_w, (E, C, P, P), jnp.float32) * 0.1      # proj.weight
    op_bias = jax.random.normal(k_b, (E,), jnp.float32) * 0.1                # proj.bias
    cls_token = jax.random.normal(k_cls, (1, 1, E), jnp.float32) * 0.02      # layer.cls_token
    pos_embed = jax.random.normal(k_pos, (1, N + 1, E), jnp.float32) * 0.02  # layer.pos_embed
    weights = jax.nn.softmax(jax.random.normal(k_a, (len(emb_choices),), jnp.float32))

    out = patchembed_mixture_forward(x, weights, op_weight, op_bias,
                                     cls_token, pos_embed, emb_choices, P)
    out = jax.block_until_ready(out)
    assert out.shape == (B, N + 1, E), out.shape

    # Independent f32 reference (same semantics as F.conv2d NCHW, original module math).
    coeff = mixture_coeff(weights, emb_choices, E)
    conv_w = op_weight * coeff[:, None, None, None]
    conv_b = op_bias * coeff
    cls_m = cls_token * coeff
    pos_m = pos_embed * coeff
    y = jax.lax.conv_general_dilated(x, conv_w, window_strides=(P, P), padding="VALID",
                                     precision=jax.lax.Precision.HIGHEST)
    y = y + conv_b.reshape(1, E, 1, 1)
    y = y.reshape(B, E, N).transpose(0, 2, 1)                        # flatten(2).transpose(1,2)
    ref = jnp.concatenate([jnp.broadcast_to(cls_m, (B, 1, E)), y], axis=1) + pos_m

    # bf16 matmul operands + bf16 output store (f32 accumulation): loosened tolerance.
    err = float(jnp.max(jnp.abs(out.astype(jnp.float32) - ref)))
    assert err < 5e-2, err
    print("KERNEL_OK")
</pallas_src>

<mosaic_0001>
module attributes {stable_mosaic.version = 11 : i64} {
  func.func @patch_embed_kernel(%arg0: i32, %arg1: i32, %arg2: memref<1x16x64xbf16, #tpu.memory_space<vmem>>, %arg3: memref<64x128xbf16, #tpu.memory_space<vmem>>, %arg4: memref<16x128xbf16, #tpu.memory_space<vmem>>, %arg5: memref<1x16x128xbf16, #tpu.memory_space<vmem>>) attributes {dimension_semantics = [#tpu.dimension_semantics<parallel>, #tpu.dimension_semantics<parallel>], iteration_bounds = array<i64: 1, 2>, scalar_prefetch = 0 : i64, scratch_operands = 0 : i64, tpu.core_type = #tpu.core_type<tc>, window_params = [{transform_indices = @transform_0, window_bounds = array<i64: 1, 16, 64>}, {pipeline_mode = #tpu.pipeline_mode<synchronous>, transform_indices = @transform_1, window_bounds = array<i64: 64, 128>}, {transform_indices = @transform_2, window_bounds = array<i64: 16, 128>}, {transform_indices = @transform_3, window_bounds = array<i64: 1, 16, 128>}]} {
    %c0 = arith.constant 0 : index
    %c0_0 = arith.constant 0 : index
    %c0_1 = arith.constant 0 : index
    %0 = vector.load %arg2[%c0, %c0_0, %c0_1] : memref<1x16x64xbf16, #tpu.memory_space<vmem>>, vector<1x16x64xbf16>
    %1 = vector.shape_cast %0 : vector<1x16x64xbf16> to vector<16x64xbf16>
    %c0_2 = arith.constant 0 : index
    %c0_3 = arith.constant 0 : index
    %2 = vector.load %arg3[%c0_2, %c0_3] : memref<64x128xbf16, #tpu.memory_space<vmem>>, vector<64x128xbf16>
    %cst = arith.constant dense<0.000000e+00> : vector<16x128xf32>
    %3 = tpu.matmul %1, %2, %cst {dimension_numbers = #tpu.dot_dimension_numbers<[1], [0], [0], [1], [0, 0, 1, 1], [], []>} : vector<16x64xbf16>, vector<64x128xbf16>, vector<16x128xf32> -> vector<16x128xf32>
    %c0_4 = arith.constant 0 : index
    %c0_5 = arith.constant 0 : index
    %4 = vector.load %arg4[%c0_4, %c0_5] : memref<16x128xbf16, #tpu.memory_space<vmem>>, vector<16x128xbf16>
    %5 = arith.extf %4 : vector<16x128xbf16> to vector<16x128xf32>
    %6 = arith.addf %3, %5 : vector<16x128xf32>
    %7 = arith.truncf %6 : vector<16x128xf32> to vector<16x128xbf16>
    %c0_6 = arith.constant 0 : index
    %c0_7 = arith.constant 0 : index
    %c0_8 = arith.constant 0 : index
    %8 = vector.load %arg5[%c0_6, %c0_7, %c0_8] : memref<1x16x128xbf16, #tpu.memory_space<vmem>>, vector<1x16x128xbf16>
    %9 = vector.shape_cast %8 : vector<1x16x128xbf16> to vector<16x128xbf16>
    %10 = vector.shape_cast %7 : vector<16x128xbf16> to vector<1x16x128xbf16>
    tpu.vector_store %arg5[%c0_6, %c0_7, %c0_8], %10 {strides = array<i32>} : memref<1x16x128xbf16, #tpu.memory_space<vmem>>, vector<1x16x128xbf16>,
    return
  }
  func.func @transform_0(%arg0: i32, %arg1: i32) -> (i32, i32, i32) {
    %c0_i32 = arith.constant 0 : i32
    %c0_i32_0 = arith.constant 0 : i32
    return %arg1, %arg0, %c0_i32 : i32, i32, i32
  }
  func.func @transform_1(%arg0: i32, %arg1: i32) -> (i32, i32) {
    %c0_i32 = arith.constant 0 : i32
    %c0_i32_0 = arith.constant 0 : i32
    %c0_i32_1 = arith.constant 0 : i32
    return %c0_i32, %c0_i32_0 : i32, i32
  }
  func.func @transform_2(%arg0: i32, %arg1: i32) -> (i32, i32) {
    %c0_i32 = arith.constant 0 : i32
    %c0_i32_0 = arith.constant 0 : i32
    return %arg0, %c0_i32 : i32, i32
  }
  func.func @transform_3(%arg0: i32, %arg1: i32) -> (i32, i32, i32) {
    %c0_i32 = arith.constant 0 : i32
    %c0_i32_0 = arith.constant 0 : i32
    return %arg1, %arg0, %c0_i32 : i32, i32, i32
  }
}

</mosaic_0001>

<llo_original>
// kernel: mul.22
$region0: #{mul.22}
  #allocation0 [shape = 's32[1]{0}', space=sflag, size = 0x4, scoped, tag = 'scoped memory for mul.22']
  %s0 = inlined_call_operand.vmem [shape: f32[32], index: 0, kind: input, shape index: {}]
  %s1 = inlined_call_operand.vmem [shape: f32[32], index: 1, kind: input, shape index: {}]
  %s2 = inlined_call_operand.vmem [shape: f32[32], index: 2, kind: output, shape index: {}]
  %v3 = vld [vmem:[%s0] sm:$0x1]
  %v4 = vld [vmem:[%s1] sm:$0x1]
  %5 = xla_tuple %v3, %v4
  %6 = xla_tuple %5
  %v7 = vmul.f32 %v3, %v4
  %8 = xla_tuple %v7
  %9 = vst [vmem:[%s2] sm:$0x1] %v7

// kernel: patchembed_mixture_forward.1
$region0: #{patchembed_mixture_forward.1}
  #allocation0 [shape = 'u32[]', space=smem, size = 0x4, offset = 0x4, fixed_abs, tag = 'smem constant byte address 0x4 - core index']
  #allocation1 [shape = 'u32[144,128]{1,0:T(1,128)}', space=vmem, size = 0x12000, scoped, tag = 'internal scratch']
  %s0 = inlined_call_operand.vmem [shape: bf16[2,16,64], index: 0, kind: input, shape index: {}]
  %s1 = inlined_call_operand.vmem [shape: bf16[64,128], index: 1, kind: input, shape index: {}]
  %s2 = inlined_call_operand.vmem [shape: bf16[16,128], index: 2, kind: input, shape index: {}]
  %s3 = inlined_call_operand.vmem [shape: bf16[2,16,128], index: 3, kind: output, shape index: {}]
  %s4 = sld [smem:[#allocation0]]
  $region45: #{patchembed_mixture_forward.1} parent=0
    _
  %s6 = ssub.s32 1, %s4
  %s7 = scalar_select 0, %s6, %s4
  loop: start=0, step=1, limit=4
  $region2: #{patchembed_mixture_forward.1} parent=0 // loop_pre_header
    _
  $region3: #{patchembed_mixture_forward.1} parent=0 // loop_header
    %s9 = sphi 0, %s13
    %p10 = scmp.ge.s32.totalorder %s9, 4
    %s16 = sphi 0, %s28
    %s17 = sphi 0, %s24
    %s18 = sphi 0, %s16
    %s19 = sphi 0, %s17
    %s20 = sphi 0, %s18
    %s21 = sphi 0, %s19
    %s33 = sphi 0, %s35
    %s36 = sphi 0, %s33
    %s37 = sphi 0, %s36
    %s53 = sphi 0, %s37
    %s57 = sphi 0, %s57
    %s59 = sphi 0, %s57
    %s60 = sphi 0, %s59
    %s74 = sphi 0, %s60
    %s80 = sphi 0, %s82
    %s83 = sphi 0, %s80
    %s84 = sphi 0, %s83
    %s100 = sphi 0, %s84
    %s108 = sphi 0, %s110
    %s111 = sphi 0, %s108
    %s112 = sphi 0, %s111
    %s128 = sphi 0, %s112
  $region4: #{patchembed_mixture_forward.1} parent=0 // loop_header_branch
    %12 = sbr.rel (%p10) target = $region8
  $region5: #{patchembed_mixture_forward.1} parent=0 // loop_body
    %s14 = ssub.s32 %s9, 1
    %s15 = ssub.s32 %s9, 2
    %s22 = sadd.s32 1, %s17
    %p23 = scmp.ge.s32.totalorder %s22, 2
    %s24 = scalar_select %p23, 0, %s22
    %s25 = sadd.s32 1, %s16
    %s26 = scalar_select %p23, %s25, %s16
    %p27 = scmp.ge.s32.totalorder %s26, 1
    %s28 = scalar_select %p27, 0, %s26
    %s29 = ssub.s32 %s17, %s24
    %s30 = ssub.s32 %s16, %s28
    %s31 = sor.u32 %s29, %s30
    %p32 = scmp.eq.s32.totalorder %s31, 0
    %s34 = sadd.s32 %s33, 1
    %s35 = scalar_select %p32, %s33, %s34
    %p38 = pneg %p32
    %p39 = scmp.eq.s32.totalorder %s9, 1
    %p40 = por %p38, %p39
    %p41 = scmp.ne.s32.totalorder %s33, %s36
    %p42 = scmp.eq.s32.totalorder %s9, 0
    %p43 = por %p41, %p42
    %p44 = scmp.ne.s32.totalorder %s33, %s36
    %p45 = scmp.eq.s32.totalorder %s14, 1
    %p46 = por %p44, %p45
    %p47 = scmp.ne.s32.totalorder %s36, %s37
    %p48 = scmp.eq.s32.totalorder %s14, 0
    %p49 = por %p47, %p48
    %p50 = scmp.ne.s32.totalorder %s36, %s37
    %p51 = scmp.eq.s32.totalorder %s15, 1
    %p52 = por %p50, %p51
    %p54 = scmp.ne.s32.totalorder %s37, %s53
    %p55 = scmp.eq.s32.totalorder %s15, 0
    %p56 = por %p54, %p55
    %s58 = sadd.s32 %s57, 1
    %p61 = scmp.eq.s32.totalorder %s9, 1
    %p62 = scmp.ne.s32.totalorder %s57, %s59
    %p63 = scmp.eq.s32.totalorder %s9, 0
    %p64 = por %p62, %p63
    %p65 = scmp.ne.s32.totalorder %s57, %s59
    %p66 = scmp.eq.s32.totalorder %s14, 1
    %p67 = por %p65, %p66
    %p68 = scmp.ne.s32.totalorder %s59, %s60
    %p69 = scmp.eq.s32.totalorder %s14, 0
    %p70 = por %p68, %p69
    %p71 = scmp.ne.s32.totalorder %s59, %s60
    %p72 = scmp.eq.s32.totalorder %s15, 1
    %p73 = por %p71, %p72
    %p75 = scmp.ne.s32.totalorder %s60, %s74
    %p76 = scmp.eq.s32.totalorder %s15, 0
    %p77 = por %p75, %p76
    %s78 = ssub.s32 %s16, %s28
    %p79 = scmp.eq.s32.totalorder %s78, 0
    %s81 = sadd.s32 %s80, 1
    %s82 = scalar_select %p79, %s80, %s81
    %p85 = pneg %p79
    %p86 = scmp.eq.s32.totalorder %s9, 1
    %p87 = por %p85, %p86
    %p88 = scmp.ne.s32.totalorder %s80, %s83
    %p89 = scmp.eq.s32.totalorder %s9, 0
    %p90 = por %p88, %p89
    %p91 = scmp.ne.s32.totalorder %s80, %s83
    %p92 = scmp.eq.s32.totalorder %s14, 1
    %p93 = por %p91, %p92
    %p94 = scmp.ne.s32.totalorder %s83, %s84
    %p95 = scmp.eq.s32.totalorder %s14, 0
    %p96 = por %p94, %p95
    %p97 = scmp.ne.s32.totalorder %s83, %s84
    %p98 = scmp.eq.s32.totalorder %s15, 1
    %p99 = por %p97, %p98
    %p101 = scmp.ne.s32.totalorder %s84, %s100
    %p102 = scmp.eq.s32.totalorder %s15, 0
    %p103 = por %p101, %p102
    %s104 = ssub.s32 %s17, %s24
    %s105 = ssub.s32 %s16, %s28
    %s106 = sor.u32 %s104, %s105
    %p107 = scmp.eq.s32.totalorder %s106, 0
    %s109 = sadd.s32 %s108, 1
    %s110 = scalar_select %p107, %s108, %s109
    %p113 = pneg %p107
    %p114 = scmp.eq.s32.totalorder %s9, 1
    %p115 = por %p113, %p114
    %p116 = scmp.ne.s32.totalorder %s108, %s111
    %p117 = scmp.eq.s32.totalorder %s9, 0
    %p118 = por %p116, %p117
    %p119 = scmp.ne.s32.totalorder %s108, %s111
    %p120 = scmp.eq.s32.totalorder %s14, 1
    %p121 = por %p119, %p120
    %p122 = scmp.ne.s32.totalorder %s111, %s112
    %p123 = scmp.eq.s32.totalorder %s14, 0
    %p124 = por %p122, %p123
    %p125 = scmp.ne.s32.totalorder %s111, %s112
    %p126 = scmp.eq.s32.totalorder %s15, 1
    %p127 = por %p125, %p126
    %p129 = scmp.ne.s32.totalorder %s112, %s128
    %p130 = scmp.eq.s32.totalorder %s15, 0
    %p131 = por %p129, %p130
    %p132 = scmp.le.s32.totalorder 1, %s9
    %p133 = scmp.lt.s32.totalorder %s9, 3
    %p134 = pnand %p132, %p133
    %p135 = pneg %p134
    // Predicated region
    $region9: #{patchembed_mixture_forward.1} parent=5 // pred_check
      _
    $region10: #{patchembed_mixture_forward.1} parent=5 // pred_check_branch
      %137 = sbr.rel (%p134) target = $region12
    $region11: #{patchembed_mixture_forward.1} parent=5 // pred_region
      %s138 = ssub.s32 %s9, 1
      // Predicated region
      $region13: #{patchembed_mixture_forward.1} parent=11 // pred_check
        %p139 = pneg %p70
      $region14: #{patchembed_mixture_forward.1} parent=11 // pred_check_branch
        %141 = sbr.rel (%p139) target = $region16
      $region15: #{patchembed_mixture_forward.1} parent=11 // pred_region
        _
      $region16: #{patchembed_mixture_forward.1} parent=11 // pred_fallthru
        _
      // Predicated region
      $region17: #{patchembed_mixture_forward.1} parent=11 // pred_check
        %p142 = pneg %p96
      $region18: #{patchembed_mixture_forward.1} parent=11 // pred_check_branch
        %144 = sbr.rel (%p142) target = $region20
      $region19: #{patchembed_mixture_forward.1} parent=11 // pred_region
        %s145 = smul.u32 2, %s18
        %p146 = scmp.lt.s32.totalorder %s145, 1
        %s147 = scalar_select %p146, %s145, 1
        %s148 = smul.addr %s147, 4
        %s149 = scalar_lea.vmem %s2, %s148
        %s150 = smul.u32 2, %s18
      $region20: #{patchembed_mixture_forward.1} parent=11 // pred_fallthru
        _
    $region12: #{patchembed_mixture_forward.1} parent=5 // pred_fallthru
      _
    %p151 = scmp.lt.s32.totalorder %s9, 2
    // Predicated region
    $region21: #{patchembed_mixture_forward.1} parent=5 // pred_check
      %p152 = pneg %p151
    $region22: #{patchembed_mixture_forward.1} parent=5 // pred_check_branch
      %154 = sbr.rel (%p152) target = $region24
    $region23: #{patchembed_mixture_forward.1} parent=5 // pred_region
      // Predicated region
      $region25: #{patchembed_mixture_forward.1} parent=23 // pred_check
        %p155 = pneg %p43
      $region26: #{patchembed_mixture_forward.1} parent=23 // pred_check_branch
        %157 = sbr.rel (%p155) target = $region28
      $region27: #{patchembed_mixture_forward.1} parent=23 // pred_region
        %s158 = smul.u32 2, %s16
        %p159 = scmp.lt.s32.totalorder %s17, 1
        %s160 = scalar_select %p159, %s17, 1
        %p161 = scmp.lt.s32.totalorder %s158, 1
        %s162 = scalar_select %p161, %s158, 1
        %s163 = smul.addr %s160, 2
        %s164 = sadd.s32 %s162, %s163
        %s165 = smul.addr %s164, 4
        %s166 = scalar_lea.vmem %s0, %s165
        %s167 = smul.u32 2, %s16
      $region28: #{patchembed_mixture_forward.1} parent=23 // pred_fallthru
        _
    $region24: #{patchembed_mixture_forward.1} parent=5 // pred_fallthru
      _
    %p168 = scmp.le.s32.totalorder 1, %s9
    %p169 = scmp.lt.s32.totalorder %s9, 3
    %p170 = pnand %p168, %p169
    %p171 = pneg %p170
    // Predicated region
    $region29: #{patchembed_mixture_forward.1} parent=5 // pred_check
      _
    $region30: #{patchembed_mixture_forward.1} parent=5 // pred_check_branch
      %173 = sbr.rel (%p170) target = $region32
    $region31: #{patchembed_mixture_forward.1} parent=5 // pred_region
      %s174 = ssub.s32 %s9, 1
      %s175 = smul.u32 2, %s18
      %p176 = scmp.lt.s32.totalorder %s19, 1
      %s177 = scalar_select %p176, %s19, 1
      %p178 = scmp.lt.s32.totalorder %s175, 1
      %s179 = scalar_select %p178, %s175, 1
      %s180 = smul.addr %s177, 2
      %s181 = sadd.s32 %s179, %s180
      %s182 = smul.addr %s181, 4
      %s183 = scalar_lea.vmem %s0, %s182
      %p184 = pneg %p49
      %p185 = pneg %p46
      %p186 = pneg %p70
      %p187 = pneg %p67
      %s188 = smul.u32 2, %s18
      %p189 = scmp.lt.s32.totalorder %s188, 1
      %s190 = scalar_select %p189, %s188, 1
      %s191 = smul.addr %s190, 4
      %s192 = scalar_lea.vmem %s2, %s191
      %p193 = pneg %p96
      %p194 = pneg %p93
      %p195 = pneg %p124
      %p196 = pneg %p121
      %s197 = smul.u32 2, %s18
      %p198 = scmp.lt.s32.totalorder %s19, 1
      %s199 = scalar_select %p198, %s19, 1
      %p200 = scmp.lt.s32.totalorder %s197, 1
      %s201 = scalar_select %p200, %s197, 1
      %s202 = smul.addr %s199, 2
      %s203 = sadd.s32 %s201, %s202
      %s204 = smul.addr %s203, 4
      %s205 = scalar_lea.vmem %s3, %s204
      %s206 = smul.u32 2, %s18
      %p207 = scmp.lt.s32.totalorder %s19, 1
      %s208 = scalar_select %p207, %s19, 1
      %p209 = scmp.lt.s32.totalorder %s206, 1
      %s210 = scalar_select %p209, %s206, 1
      %s211 = smul.addr %s208, 2
      %s212 = sadd.s32 %s210, %s211
      %s213 = smul.addr %s212, 4
      %s214 = scalar_lea.vmem %s0, %s213
      %s215 = smul.u32 2, %s18
      %s216 = smul.u32 2, %s18
      %p217 = scmp.lt.s32.totalorder %s216, 1
      %s218 = scalar_select %p217, %s216, 1
      %s219 = smul.addr %s218, 4
      %s220 = scalar_lea.vmem %s2, %s219
      %s221 = smul.u32 2, %s18
      %s222 = smul.u32 2, %s18
      %p223 = scmp.lt.s32.totalorder %s19, 1
      %s224 = scalar_select %p223, %s19, 1
      %p225 = scmp.lt.s32.totalorder %s222, 1
      %s226 = scalar_select %p225, %s222, 1
      %s227 = smul.addr %s224, 2
      %s228 = sadd.s32 %s226, %s227
      %s229 = smul.addr %s228, 4
      %s230 = scalar_lea.vmem %s3, %s229
      %s231 = smul.u32 2, %s18
      %v233 = vld [vmem:[%s214] sm:$0xf]
      %v234 = vld [vmem:[%s214 + $0x4] sm:$0xf]
      %v235 = vld [vmem:[%s1] sm:$0xf]
      %v236 = vld [vmem:[%s1 + $0x4] sm:$0xf]
      %v237 = vld [vmem:[%s1 + $0x8] sm:$0xf]
      %v238 = vld [vmem:[%s1 + $0xc] sm:$0xf]
      %v239 = vld [vmem:[%s1 + $0x10] sm:$0xf]
      %v240 = vld [vmem:[%s1 + $0x14] sm:$0xf]
      %v241 = vld [vmem:[%s1 + $0x18] sm:$0xf]
      %v242 = vld [vmem:[%s1 + $0x1c] sm:$0xf]
      %v243 = vld [vmem:[%s220] sm:$0xf]
      %v244 = vld [vmem:[%s220 + $0x4] sm:$0xf]
      %v245 = vunpack.c.l.bf16 %v243
      %v246 = vunpack.c.l.bf16 %v244
      %v249 = vunpack.c.l.b16 %v233
      %v250 = vunpack.c.l.b16 %v234
      %v251 = vpack.c.b16 %v250, %v249
      %v260 = vunpack.c.l.b16 %v235
      %v261 = vunpack.c.l.b16 %v236
      %v262 = vunpack.c.l.b16 %v237
      %v263 = vunpack.c.l.b16 %v238
      %v264 = vunpack.c.l.b16 %v239
      %v265 = vunpack.c.l.b16 %v240
      %v266 = vunpack.c.l.b16 %v241
      %v267 = vunpack.c.l.b16 %v242
      %v268 = vpack.c.b16 %v261, %v260
      %v269 = vpack.c.b16 %v263, %v262
      %v270 = vpack.c.b16 %v265, %v264
      %v271 = vpack.c.b16 %v267, %v266
      %vm276 = vcmask 523264
      %v278 = vsel %vm276, %v251, 0
      %280 = vmatprep.subr.bf16.mxu0 0
      %281 = vmatpush1.bf16.msra.mxu0 %v268
      %282 = vmatprep.subr.bf16.mxu0 0
      %283 = vmatpush1.bf16.msra.mxu0 %v269
      %284 = vmatprep.subr.bf16.mxu0 0
      %285 = vmatpush1.bf16.msra.mxu0 %v270
      %286 = vmatprep.subr.bf16.mxu0 0
      %287 = vmatpush1.bf16.msra.mxu0 %v271
      %288 = vmatprep.subr.bf16.mxu0 0
      %289 = vmatpush1.bf16.msra.mxu0 0
      %290 = vmatprep.subr.bf16.mxu0 0
      %291 = vmatpush1.bf16.msra.mxu0 0
      %292 = vmatprep.subr.bf16.mxu0 0
      %293 = vmatpush1.bf16.msra.mxu0 0
      %294 = vmatprep.subr.bf16.mxu0 0
      %295 = vmatpush1.bf16.msra.mxu0 0
      %296 = vmatprep.subr.bf16.mxu0 0
      %297 = vmatpush1.bf16.msra.mxu0 0
      %298 = vmatprep.subr.bf16.mxu0 0
      %299 = vmatpush1.bf16.msra.mxu0 0
      %300 = vmatprep.subr.bf16.mxu0 0
      %301 = vmatpush1.bf16.msra.mxu0 0
      %302 = vmatprep.subr.bf16.mxu0 0
      %303 = vmatpush1.bf16.msra.mxu0 0
      %304 = vmatprep.subr.bf16.mxu0 0
      %305 = vmatpush1.bf16.msra.mxu0 0
      %306 = vmatprep.subr.bf16.mxu0 0
      %307 = vmatpush1.bf16.msra.mxu0 0
      %308 = vmatprep.subr.bf16.mxu0 0
      %309 = vmatpush1.bf16.msra.mxu0 0
      %310 = vmatprep.subr.bf16.mxu0 0
      %311 = vmatpush1.bf16.msra.mxu0 0
      %312 = vmatprep.mubr.bf16.mxu0 0
      %313 = vmatmul.mubr.bf16.gmra.mrb[0].mxu0 %v278
      %v314 = vpop.f32.mrb[0].mxu0
      %v315 = vadd.f32 %v245, %v314
      %v316 = vpop.f32.mrb[0].mxu0
      %v317 = vpop.f32.mrb[0].mxu0
      %v318 = vadd.f32 %v246, %v317
      %v319 = vpop.f32.mrb[0].mxu0
      %320 = vdwg.mxu0
      %v321 = vpack.c.bf16 %v318, %v315
      %v323 = vunpack.c.l.b16 %v321
      %v324 = vunpack.c.h.b16 %v321
      %v325 = vpack.c.b16 %v323, %v323
      %v326 = vpack.c.b16 %v324, %v324
      %329 = vst [vmem:[%s230] sm:$0xf] %v325
      %330 = vst [vmem:[%s230 + $0x4] sm:$0xf] %v326
      %s331 = smul.u32 2, %s18
      %p332 = scmp.lt.s32.totalorder %s19, 1
      %s333 = scalar_select %p332, %s19, 1
      %p334 = scmp.lt.s32.totalorder %s331, 1
      %s335 = scalar_select %p334, %s331, 1
      %s336 = smul.addr %s333, 2
      %s337 = sadd.s32 %s335, %s336
      %s338 = smul.addr %s337, 4
      %s339 = scalar_lea.vmem %s3, %s338
      // Predicated region
      $region33: #{patchembed_mixture_forward.1} parent=31 // pred_check
        %p340 = pneg %p121
      $region34: #{patchembed_mixture_forward.1} parent=31 // pred_check_branch
        %342 = sbr.rel (%p340) target = $region36
      $region35: #{patchembed_mixture_forward.1} parent=31 // pred_region
        %s343 = smul.u32 2, %s18
      $region36: #{patchembed_mixture_forward.1} parent=31 // pred_fallthru
        _
    $region32: #{patchembed_mixture_forward.1} parent=5 // pred_fallthru
      _
    %p344 = scmp.le.s32.totalorder 2, %s9
    // Predicated region
    $region37: #{patchembed_mixture_forward.1} parent=5 // pred_check
      %p345 = pneg %p344
    $region38: #{patchembed_mixture_forward.1} parent=5 // pred_check_branch
      %347 = sbr.rel (%p345) target = $region40
    $region39: #{patchembed_mixture_forward.1} parent=5 // pred_region
      %s348 = ssub.s32 %s9, 2
      // Predicated region
      $region41: #{patchembed_mixture_forward.1} parent=39 // pred_check
        %p349 = pneg %p127
      $region42: #{patchembed_mixture_forward.1} parent=39 // pred_check_branch
        %351 = sbr.rel (%p349) target = $region44
      $region43: #{patchembed_mixture_forward.1} parent=39 // pred_region
        %s352 = smul.u32 2, %s20
        %p353 = scmp.lt.s32.totalorder %s21, 1
        %s354 = scalar_select %p353, %s21, 1
        %p355 = scmp.lt.s32.totalorder %s352, 1
        %s356 = scalar_select %p355, %s352, 1
        %s357 = smul.addr %s354, 2
        %s358 = sadd.s32 %s356, %s357
        %s359 = smul.addr %s358, 4
        %s360 = scalar_lea.vmem %s3, %s359
      $region44: #{patchembed_mixture_forward.1} parent=39 // pred_fallthru
        _
    $region40: #{patchembed_mixture_forward.1} parent=5 // pred_fallthru
      _
  $region6: #{patchembed_mixture_forward.1} parent=0 // loop_footer
    %s13 = sadd.s32 1, %s9
  $region7: #{patchembed_mixture_forward.1} parent=0 // loop_footer_branch
    %8 = sbr.rel target = $region3
  $region8: #{patchembed_mixture_forward.1} parent=0 // loop_exit
    _

</llo_original>
